<compile_context>
chip_gen: v6e
topology: v6e:2x2x1
jax: 0.10.0
libtpu: 0.0.40
codegen_flags: <defaults>
</compile_context>

<pallas_src>
import functools
import math

import numpy as np

import jax
import jax.numpy as jnp
from jax.experimental import pallas as pl
from jax.experimental.pallas import tpu as pltpu


def _round_up(x, m):
    return ((x + m - 1) // m) * m


def _cdiv(a, b):
    return -(-a // b)


# Fixed architecture widths from the PyTorch module.
_W_SLAB_EXTRA = 3 * 128   # rows for fused layers B, C, D+E (each padded to 128)
_N_BIAS_ROWS = 8          # 4 rows used (A, B, C, D+E), padded to sublane mult.
_MAX_BATCH_TILE = 1024    # batch tile cap (VMEM/step ~1.5 MiB, safe everywhere)
_SPLIT_BATCH = 512        # B >= this -> force >= 2 grid steps (v7x 2nd TC)


# -----------------------------------------------------------------------------
# Kernel factory.  Column layout of the fused 128-wide activations:
#   layer A  (ReLU): [actor_h1 (64) | critic_h1 (64)]
#   layer B  (ReLU): [actor_h2 (64) | critic_h2 (64)]          (block-diag W)
#   layer C  (ReLU): [actor_h3 (32) | critic_h3 (32) | 0...]   (block-diag W)
#   layer DE       : [means (D) | s_raw (D) | Q (1)  | 0...]   (host-fused
#                     W_D @ W_E with Q routed straight through)
# Output slab = layer DE with softplus applied only on lanes [D, 2D).
# Biases live in the last _N_BIAS_ROWS rows of the weight slab.
# -----------------------------------------------------------------------------
def _make_kernel(in_rows, out_dims):
    r_a = 0
    r_b = in_rows
    r_c = in_rows + 128
    r_de = in_rows + 256
    r_bias = in_rows + 384

    def kernel(x_ref, w_ref, out_ref):
        x = x_ref[...]                                       # (tb, in_rows)
        b_all = w_ref[pl.ds(r_bias, _N_BIAS_ROWS), :]        # (8, 128)

        def layer(h, row, rows, brow, relu):
            w = w_ref[pl.ds(row, rows), :]                   # static slice
            y = jnp.dot(h, w, preferred_element_type=jnp.float32)
            y = y + b_all[brow:brow + 1, :]
            return jnp.maximum(y, 0.0) if relu else y

        h = layer(x, r_a, in_rows, 0, True)     # actor1 | critic1
        h = layer(h, r_b, 128, 1, True)         # actor2 | critic2
        h = layer(h, r_c, 128, 2, True)         # actor3 | critic3
        h = layer(h, r_de, 128, 3, False)       # means | s_raw | Q  (fused D+E)

        # Stable softplus + epsilon (EUP work, essentially free).
        sp = jnp.maximum(h, 0.0) + jnp.log(1.0 + jnp.exp(-jnp.abs(h))) + 1e-6
        lane = jax.lax.broadcasted_iota(jnp.int32, h.shape, 1)
        is_std = (lane >= out_dims) & (lane < 2 * out_dims)
        out_ref[...] = jnp.where(is_std, sp, h)

    return kernel


# -----------------------------------------------------------------------------
# Parameter init (deterministic, mimics nn.Linear default U(-1/sqrt(fan_in),..))
# -----------------------------------------------------------------------------
def _init_linear(key, fan_in, fan_out):
    kw, kb = jax.random.split(key)
    bound = 1.0 / math.sqrt(fan_in)
    w = jax.random.uniform(kw, (fan_in, fan_out), jnp.float32, -bound, bound)
    b = jax.random.uniform(kb, (fan_out,), jnp.float32, -bound, bound)
    return w, b


def init_actor_critic_params(key, input_dims, output_dims):
    keys = jax.random.split(key, 10)
    p = {}
    # actor trunk
    p["aw1"], p["ab1"] = _init_linear(keys[0], input_dims, 64)
    p["aw2"], p["ab2"] = _init_linear(keys[1], 64, 64)
    p["aw3"], p["ab3"] = _init_linear(keys[2], 64, 32)
    p["aw4"], p["ab4"] = _init_linear(keys[3], 32, 32)
    # heads
    p["mw"], p["mb"] = _init_linear(keys[4], 32, output_dims)
    p["sw"], p["sb"] = _init_linear(keys[5], 32, output_dims)
    # critic
    p["cw1"], p["cb1"] = _init_linear(keys[6], input_dims, 64)
    p["cw2"], p["cb2"] = _init_linear(keys[7], 64, 64)
    p["cw3"], p["cb3"] = _init_linear(keys[8], 64, 32)
    p["cw4"], p["cb4"] = _init_linear(keys[9], 32, 1)
    return p


# -----------------------------------------------------------------------------
# Host-side packing of the 20 parameter arrays into ONE lane-dense slab
# (weights + fused D/E layer + biases).  NOT jitted (uses numpy f64 for fusion).
# -----------------------------------------------------------------------------
def pack_actor_critic_params(params, input_dims, output_dims):
    assert 2 * output_dims + 1 <= 128, "output_dims must be <= 63"
    d = output_dims
    in_rows = _round_up(input_dims, 8)
    n_rows = in_rows + _W_SLAB_EXTRA + _N_BIAS_ROWS

    # Fuse layer D (actor4 / critic4) with layer E (mean/std heads + Q identity)
    # in float64: W_DE = W_D @ W_E, b_DE = b_D @ W_E + b_E.  Exact linear algebra
    # (no ReLU in between), best-rounded back to f32.
    aw4 = np.asarray(params["aw4"], np.float64)
    ab4 = np.asarray(params["ab4"], np.float64)
    mw = np.asarray(params["mw"], np.float64)
    mb = np.asarray(params["mb"], np.float64)
    sw = np.asarray(params["sw"], np.float64)
    sb = np.asarray(params["sb"], np.float64)
    w_de_mean = (aw4 @ mw).astype(np.float32)        # (32, d)
    w_de_std = (aw4 @ sw).astype(np.float32)         # (32, d)
    b_de_mean = (ab4 @ mw + mb).astype(np.float32)   # (d,)
    b_de_std = (ab4 @ sw + sb).astype(np.float32)    # (d,)

    w = jnp.zeros((n_rows, 128), jnp.float32)
    # layer A: x -> [actor1 | critic1]
    w = w.at[0:input_dims, 0:64].set(params["aw1"])
    w = w.at[0:input_dims, 64:128].set(params["cw1"])
    r = in_rows
    # layer B: block-diagonal 64x64 actor / 64x64 critic
    w = w.at[r:r + 64, 0:64].set(params["aw2"])
    w = w.at[r + 64:r + 128, 64:128].set(params["cw2"])
    r += 128
    # layer C: block-diagonal 64x32 actor / 64x32 critic
    w = w.at[r:r + 64, 0:32].set(params["aw3"])
    w = w.at[r + 64:r + 128, 32:64].set(params["cw3"])
    r += 128
    # fused layer D+E: actor_h3 (cols 0:32) -> means/stds, critic_h3 -> Q
    w = w.at[r:r + 32, 0:d].set(jnp.asarray(w_de_mean))
    w = w.at[r:r + 32, d:2 * d].set(jnp.asarray(w_de_std))
    w = w.at[r + 32:r + 64, 2 * d:2 * d + 1].set(params["cw4"])
    r += 128
    # bias rows (folded into the weight slab tail)
    w = w.at[r + 0, 0:64].set(params["ab1"])
    w = w.at[r + 0, 64:128].set(params["cb1"])
    w = w.at[r + 1, 0:64].set(params["ab2"])
    w = w.at[r + 1, 64:128].set(params["cb2"])
    w = w.at[r + 2, 0:32].set(params["ab3"])
    w = w.at[r + 2, 32:64].set(params["cb3"])
    w = w.at[r + 3, 0:d].set(jnp.asarray(b_de_mean))
    w = w.at[r + 3, d:2 * d].set(jnp.asarray(b_de_std))
    w = w.at[r + 3, 2 * d].set(params["cb4"][0])
    return w


# -----------------------------------------------------------------------------
# Wrapper
# -----------------------------------------------------------------------------
@functools.partial(jax.jit, static_argnames=("output_dims",))
def actor_critic_forward(state, w_slab, *, output_dims):
    """state: (B, inputDims).  Returns (means, stdDevs, Qvalue), float32."""
    B, input_dims = state.shape
    d = output_dims
    in_rows = _round_up(input_dims, 8)
    n_rows = w_slab.shape[0]

    # Balanced batch tiling: minimal padding, and >= 2 "parallel" grid steps
    # for large batches so both v7x TensorCores are used.
    steps = max(1, _cdiv(B, _MAX_BATCH_TILE))
    if steps == 1 and B >= _SPLIT_BATCH:
        steps = 2
    tb = _round_up(_cdiv(B, steps), 8)
    b_pad = steps * tb

    # Sublane-aligned input slab; zero-padded rows/cols are inert because the
    # corresponding weight-slab rows are zero.  Kept at its natural lane width
    # (not padded to 128) to avoid 16x HBM over-read for narrow inputs.
    x = jnp.pad(state.astype(jnp.float32),
                ((0, b_pad - B), (0, in_rows - input_dims)))

    kernel = _make_kernel(in_rows, d)
    out = pl.pallas_call(
        kernel,
        out_shape=jax.ShapeDtypeStruct((b_pad, 128), jnp.float32),
        grid=(steps,),
        in_specs=[
            pl.BlockSpec((tb, in_rows), lambda i: (i, 0)),
            pl.BlockSpec((n_rows, 128), lambda i: (0, 0)),
        ],
        out_specs=pl.BlockSpec((tb, 128), lambda i: (i, 0)),
        compiler_params=pltpu.CompilerParams(
            dimension_semantics=("parallel",)),
    )(x, w_slab)

    means = out[:B, 0:d]
    std_devs = out[:B, d:2 * d]
    q_value = out[:B, 2 * d:2 * d + 1]
    return means, std_devs, q_value


# -----------------------------------------------------------------------------
# Pure-JAX reference (same math as the PyTorch module, outside Pallas)
# -----------------------------------------------------------------------------
def _reference_forward(state, params):
    def lin(h, w, b):
        return h @ w + b

    x = state.astype(jnp.float32)
    h = jnp.maximum(lin(x, params["aw1"], params["ab1"]), 0.0)
    h = jnp.maximum(lin(h, params["aw2"], params["ab2"]), 0.0)
    h = jnp.maximum(lin(h, params["aw3"], params["ab3"]), 0.0)
    h = lin(h, params["aw4"], params["ab4"])
    means = lin(h, params["mw"], params["mb"])
    stds = jnp.log1p(jnp.exp(lin(h, params["sw"], params["sb"]))) + 1e-6
    c = jnp.maximum(lin(x, params["cw1"], params["cb1"]), 0.0)
    c = jnp.maximum(lin(c, params["cw2"], params["cb2"]), 0.0)
    c = jnp.maximum(lin(c, params["cw3"], params["cb3"]), 0.0)
    q = lin(c, params["cw4"], params["cb4"])
    return means, stds, q[:, None] if q.ndim == 1 else q


if __name__ == "__main__":
    INPUT_DIMS = 8
    OUTPUT_DIMS = 4
    BATCH = 2

    key = jax.random.PRNGKey(0)
    k_params, k_state, k_big, k_huge = jax.random.split(key, 4)

    params = init_actor_critic_params(k_params, INPUT_DIMS, OUTPUT_DIMS)
    w_slab = pack_actor_critic_params(params, INPUT_DIMS, OUTPUT_DIMS)
    state = jax.random.normal(k_state, (BATCH, INPUT_DIMS), jnp.float32)

    means, std_devs, q_value = actor_critic_forward(
        state, w_slab, output_dims=OUTPUT_DIMS)
    jax.block_until_ready((means, std_devs, q_value))

    ref_means, ref_stds, ref_q = _reference_forward(state, params)
    assert means.shape == (BATCH, OUTPUT_DIMS)
    assert std_devs.shape == (BATCH, OUTPUT_DIMS)
    assert q_value.shape == (BATCH, 1)
    assert jnp.allclose(means, ref_means, atol=2e-5)
    assert jnp.allclose(std_devs, ref_stds, atol=2e-5)
    assert jnp.allclose(q_value, ref_q, atol=2e-5)
    assert bool(jnp.all(std_devs > 0.0))

    # Mid-size batch: single balanced tile (304 rows for B=300, ~1% padding).
    big_state = jax.random.normal(k_big, (300, INPUT_DIMS), jnp.float32)
    bm, bs, bq = actor_critic_forward(big_state, w_slab,
                                      output_dims=OUTPUT_DIMS)
    jax.block_until_ready((bm, bs, bq))
    rbm, rbs, rbq = _reference_forward(big_state, params)
    assert jnp.allclose(bm, rbm, atol=1e-4)
    assert jnp.allclose(bs, rbs, atol=1e-4)
    assert jnp.allclose(bq, rbq, atol=1e-4)

    # Large batch: exercises the >= 2-step "parallel" grid path (v7x 2 TCs).
    huge_state = jax.random.normal(k_huge, (600, INPUT_DIMS), jnp.float32)
    hm, hs, hq = actor_critic_forward(huge_state, w_slab,
                                      output_dims=OUTPUT_DIMS)
    jax.block_until_ready((hm, hs, hq))
    rhm, rhs, rhq = _reference_forward(huge_state, params)
    assert hm.shape == (600, OUTPUT_DIMS) and hq.shape == (600, 1)
    assert jnp.allclose(hm, rhm, atol=1e-4)
    assert jnp.allclose(hs, rhs, atol=1e-4)
    assert jnp.allclose(hq, rhq, atol=1e-4)

    print("KERNEL_OK")
</pallas_src>

<mosaic_0001>
module attributes {stable_mosaic.version = 11 : i64} {
  func.func @kernel(%arg0: i32, %arg1: memref<8x8xf32, #tpu.memory_space<vmem>>, %arg2: memref<400x128xf32, #tpu.memory_space<vmem>>, %arg3: memref<8x128xf32, #tpu.memory_space<vmem>>) attributes {dimension_semantics = [#tpu.dimension_semantics<parallel>], iteration_bounds = array<i64: 1>, scalar_prefetch = 0 : i64, scratch_operands = 0 : i64, tpu.core_type = #tpu.core_type<tc>, window_params = [{transform_indices = @transform_0, window_bounds = array<i64: 8, 8>}, {pipeline_mode = #tpu.pipeline_mode<synchronous>, transform_indices = @transform_1, window_bounds = array<i64: 400, 128>}, {transform_indices = @transform_2, window_bounds = array<i64: 8, 128>}]} {
    %c0 = arith.constant 0 : index
    %c0_0 = arith.constant 0 : index
    %0 = vector.load %arg1[%c0, %c0_0] : memref<8x8xf32, #tpu.memory_space<vmem>>, vector<8x8xf32>
    %c392 = arith.constant 392 : index
    %c0_1 = arith.constant 0 : index
    %1 = vector.load %arg2[%c392, %c0_1] : memref<400x128xf32, #tpu.memory_space<vmem>>, vector<8x128xf32>
    %c0_2 = arith.constant 0 : index
    %c0_3 = arith.constant 0 : index
    %2 = vector.load %arg2[%c0_2, %c0_3] : memref<400x128xf32, #tpu.memory_space<vmem>>, vector<8x128xf32>
    %cst = arith.constant dense<0.000000e+00> : vector<8x128xf32>
    %3 = tpu.matmul %0, %2, %cst {dimension_numbers = #tpu.dot_dimension_numbers<[1], [0], [0], [1], [0, 0, 1, 1], [], []>} : vector<8x8xf32>, vector<8x128xf32>, vector<8x128xf32> -> vector<8x128xf32>
    %4 = vector.extract_strided_slice %1 {offsets = [0, 0], sizes = [1, 128], strides = [1, 1]} : vector<8x128xf32> to vector<1x128xf32>
    %5 = vector.broadcast %4 : vector<1x128xf32> to vector<8x128xf32>
    %6 = arith.addf %3, %5 : vector<8x128xf32>
    %cst_4 = arith.constant 0.000000e+00 : f32
    %7 = vector.broadcast %cst_4 : f32 to vector<8x128xf32>
    %8 = arith.maximumf %6, %7 : vector<8x128xf32>
    %c8 = arith.constant 8 : index
    %c0_5 = arith.constant 0 : index
    %9 = vector.load %arg2[%c8, %c0_5] : memref<400x128xf32, #tpu.memory_space<vmem>>, vector<128x128xf32>
    %cst_6 = arith.constant dense<0.000000e+00> : vector<8x128xf32>
    %10 = tpu.matmul %8, %9, %cst_6 {dimension_numbers = #tpu.dot_dimension_numbers<[1], [0], [0], [1], [0, 0, 1, 1], [], []>} : vector<8x128xf32>, vector<128x128xf32>, vector<8x128xf32> -> vector<8x128xf32>
    %11 = vector.extract_strided_slice %1 {offsets = [1, 0], sizes = [1, 128], strides = [1, 1]} : vector<8x128xf32> to vector<1x128xf32>
    %12 = vector.broadcast %11 : vector<1x128xf32> to vector<8x128xf32>
    %13 = arith.addf %10, %12 : vector<8x128xf32>
    %cst_7 = arith.constant 0.000000e+00 : f32
    %14 = vector.broadcast %cst_7 : f32 to vector<8x128xf32>
    %15 = arith.maximumf %13, %14 : vector<8x128xf32>
    %c136 = arith.constant 136 : index
    %c0_8 = arith.constant 0 : index
    %16 = vector.load %arg2[%c136, %c0_8] : memref<400x128xf32, #tpu.memory_space<vmem>>, vector<128x128xf32>
    %cst_9 = arith.constant dense<0.000000e+00> : vector<8x128xf32>
    %17 = tpu.matmul %15, %16, %cst_9 {dimension_numbers = #tpu.dot_dimension_numbers<[1], [0], [0], [1], [0, 0, 1, 1], [], []>} : vector<8x128xf32>, vector<128x128xf32>, vector<8x128xf32> -> vector<8x128xf32>
    %18 = vector.extract_strided_slice %1 {offsets = [2, 0], sizes = [1, 128], strides = [1, 1]} : vector<8x128xf32> to vector<1x128xf32>
    %19 = vector.broadcast %18 : vector<1x128xf32> to vector<8x128xf32>
    %20 = arith.addf %17, %19 : vector<8x128xf32>
    %cst_10 = arith.constant 0.000000e+00 : f32
    %21 = vector.broadcast %cst_10 : f32 to vector<8x128xf32>
    %22 = arith.maximumf %20, %21 : vector<8x128xf32>
    %c264 = arith.constant 264 : index
    %c0_11 = arith.constant 0 : index
    %23 = vector.load %arg2[%c264, %c0_11] : memref<400x128xf32, #tpu.memory_space<vmem>>, vector<128x128xf32>
    %cst_12 = arith.constant dense<0.000000e+00> : vector<8x128xf32>
    %24 = tpu.matmul %22, %23, %cst_12 {dimension_numbers = #tpu.dot_dimension_numbers<[1], [0], [0], [1], [0, 0, 1, 1], [], []>} : vector<8x128xf32>, vector<128x128xf32>, vector<8x128xf32> -> vector<8x128xf32>
    %25 = vector.extract_strided_slice %1 {offsets = [3, 0], sizes = [1, 128], strides = [1, 1]} : vector<8x128xf32> to vector<1x128xf32>
    %26 = vector.broadcast %25 : vector<1x128xf32> to vector<8x128xf32>
    %27 = arith.addf %24, %26 : vector<8x128xf32>
    %cst_13 = arith.constant 0.000000e+00 : f32
    %28 = vector.broadcast %cst_13 : f32 to vector<8x128xf32>
    %29 = arith.maximumf %27, %28 : vector<8x128xf32>
    %30 = math.absf %27 : vector<8x128xf32>
    %cst_14 = arith.constant 0.000000e+00 : f32
    %31 = vector.broadcast %cst_14 : f32 to vector<8x128xf32>
    %32 = arith.subf %31, %30 : vector<8x128xf32>
    %33 = math.exp %32 : vector<8x128xf32>
    %cst_15 = arith.constant 1.000000e+00 : f32
    %34 = vector.broadcast %cst_15 : f32 to vector<8x128xf32>
    %35 = arith.addf %34, %33 : vector<8x128xf32>
    %36 = math.log %35 : vector<8x128xf32>
    %37 = arith.addf %29, %36 : vector<8x128xf32>
    %cst_16 = arith.constant 9.99999997E-7 : f32
    %38 = vector.broadcast %cst_16 : f32 to vector<8x128xf32>
    %39 = arith.addf %37, %38 : vector<8x128xf32>
    %40 = tpu.iota {dimensions = array<i32: 1>} : vector<8x128xi32>
    %c4_i32 = arith.constant 4 : i32
    %41 = vector.broadcast %c4_i32 : i32 to vector<8x128xi32>
    %42 = arith.cmpi sge, %40, %41 : vector<8x128xi32>
    %c8_i32 = arith.constant 8 : i32
    %43 = vector.broadcast %c8_i32 : i32 to vector<8x128xi32>
    %44 = arith.cmpi slt, %40, %43 : vector<8x128xi32>
    %45 = arith.andi %42, %44 : vector<8x128xi1>
    %46 = arith.select %45, %39, %27 : vector<8x128xi1>, vector<8x128xf32>
    %c0_17 = arith.constant 0 : index
    %c0_18 = arith.constant 0 : index
    %47 = vector.load %arg3[%c0_17, %c0_18] : memref<8x128xf32, #tpu.memory_space<vmem>>, vector<8x128xf32>
    tpu.vector_store %arg3[%c0_17, %c0_18], %46 {strides = array<i32>} : memref<8x128xf32, #tpu.memory_space<vmem>>, vector<8x128xf32>,
    return
  }
  func.func @transform_0(%arg0: i32) -> (i32, i32) {
    %c0_i32 = arith.constant 0 : i32
    %c0_i32_0 = arith.constant 0 : i32
    return %arg0, %c0_i32 : i32, i32
  }
  func.func @transform_1(%arg0: i32) -> (i32, i32) {
    %c0_i32 = arith.constant 0 : i32
    %c0_i32_0 = arith.constant 0 : i32
    %c0_i32_1 = arith.constant 0 : i32
    return %c0_i32, %c0_i32_0 : i32, i32
  }
  func.func @transform_2(%arg0: i32) -> (i32, i32) {
    %c0_i32 = arith.constant 0 : i32
    %c0_i32_0 = arith.constant 0 : i32
    return %arg0, %c0_i32 : i32, i32
  }
}

</mosaic_0001>

<llo_original>
// kernel: actor_critic_forward.1
$region0: #{actor_critic_forward.1}
  #allocation0 [shape = 'u32[]', space=smem, size = 0x4, offset = 0x4, fixed_abs, tag = 'smem constant byte address 0x4 - core index']
  #allocation1 [shape = 'u32[144,128]{1,0:T(1,128)}', space=vmem, size = 0x12000, scoped, tag = 'internal scratch']
  %s0 = inlined_call_operand.vmem [shape: f32[8,8], index: 0, kind: input, shape index: {}]
  %s1 = inlined_call_operand.hbm [shape: f32[400,128], index: 1, kind: input, shape index: {}]
  %s2 = inlined_call_operand.vmem [shape: f32[8,128], index: 2, kind: output, shape index: {}]
  %s3 = sld [smem:[#allocation0]]
  $region22: #{actor_critic_forward.1} parent=0
    _
  %s5 = ssub.s32 1, %s3
  %s6 = scalar_select 0, %s5, %s3
  $region1: #{actor_critic_forward.1} parent=0
    #allocation2 [shape = 'u8[204800]{0}', space=vmem, size = 0x32000, scoped, tag = 'input window, operand 1, single buffered']
    #allocation3 [shape = 's32[1]{0}', space=sflag, size = 0x4, scoped, tag = 'scoped memory for actor_critic_forward.1']
    %7 = vsyncpa [#allocation3], 0
    // Predicated region
    $region2: #{actor_critic_forward.1} parent=1 // pred_check
      _
    $region3: #{actor_critic_forward.1} parent=1 // pred_check_branch
      %9 = sbr.rel (0) target = $region5
    $region4: #{actor_critic_forward.1} parent=1 // pred_region
      _
    $region5: #{actor_critic_forward.1} parent=1 // pred_fallthru
      _
    // Predicated region
    $region6: #{actor_critic_forward.1} parent=1 // pred_check
      _
    $region7: #{actor_critic_forward.1} parent=1 // pred_check_branch
      %11 = sbr.rel (0) target = $region9
    $region8: #{actor_critic_forward.1} parent=1 // pred_region
      %s13 = ssub.s32 6400, 6400
      %14 = vsyncadd [#allocation3], %s13
      %s15 = sshll.u32 [#allocation2], 4
      %s16 = int_to_ptr.vmem [resolvable:$true] %s15
      %21 = dma.hbm_to_vmem [thread:$0]  %s1, 6400, %s16, [#allocation3], 128, 128, 8
    $region9: #{actor_critic_forward.1} parent=1 // pred_fallthru
      _
    // Predicated region
    $region10: #{actor_critic_forward.1} parent=1 // pred_check
      _
    $region11: #{actor_critic_forward.1} parent=1 // pred_check_branch
      %23 = sbr.rel (0) target = $region13
    $region12: #{actor_critic_forward.1} parent=1 // pred_region
      %24 = dma.done [#allocation3], 6400
    $region13: #{actor_critic_forward.1} parent=1 // pred_fallthru
      _
    %v25 = vld [vmem:[%s0] sm:$0xff]
    %v26 = vld [vmem:[#allocation2 + $0x188] sm:$0xff]
    %v27 = vld [vmem:[#allocation2] sm:$0xff]
    %v28 = vlaneseq
    %v29 = vshrl.u32 %v28, 7
    %v30 = vsub.s32 0, %v29
    %v31 = vrot.slane %v26, %v30
    %vm32 = vcmask 64512
    %v34 = vsel %vm32, %v25, 0
    %36 = vmatprep.subr.mxu0 0.0
    %37 = vmatpush1.msra.mxu0 0.0
    %38 = vmatprep.subr.mxu0 0.0
    %39 = vmatpush1.msra.mxu0 0.0
    %40 = vmatprep.subr.mxu0 0.0
    %41 = vmatpush1.msra.mxu0 0.0
    %42 = vmatprep.subr.mxu0 0.0
    %43 = vmatpush1.msra.mxu0 0.0
    %44 = vmatprep.subr.mxu0 0.0
    %45 = vmatpush1.msra.mxu0 0.0
    %46 = vmatprep.subr.mxu0 0.0
    %47 = vmatpush1.msra.mxu0 0.0
    %48 = vmatprep.subr.mxu0 0.0
    %49 = vmatpush1.msra.mxu0 0.0
    %50 = vmatprep.subr.mxu0 0.0
    %51 = vmatpush1.msra.mxu0 0.0
    %52 = vmatprep.subr.mxu0 0.0
    %53 = vmatpush1.msra.mxu0 0.0
    %54 = vmatprep.subr.mxu0 0.0
    %55 = vmatpush1.msra.mxu0 0.0
    %56 = vmatprep.subr.mxu0 0.0
    %57 = vmatpush1.msra.mxu0 0.0
    %58 = vmatprep.subr.mxu0 0.0
    %59 = vmatpush1.msra.mxu0 0.0
    %60 = vmatprep.subr.mxu0 0.0
    %61 = vmatpush1.msra.mxu0 0.0
    %62 = vmatprep.subr.mxu0 0.0
    %63 = vmatpush1.msra.mxu0 0.0
    %64 = vmatprep.subr.mxu0 0.0
    %65 = vmatpush1.msra.mxu0 0.0
    %66 = vmatprep.subr.mxu0 0.0
    %67 = vmatpush1.msra.mxu0 %v27
    %68 = vmatprep.subr.mxu0 0.0
    %69 = vmatpush2.msra.mxu0 0.0
    %70 = vmatprep.subr.mxu0 0.0
    %71 = vmatpush2.msra.mxu0 0.0
    %72 = vmatprep.subr.mxu0 0.0
    %73 = vmatpush2.msra.mxu0 0.0
    %74 = vmatprep.subr.mxu0 0.0
    %75 = vmatpush2.msra.mxu0 0.0
    %76 = vmatprep.subr.mxu0 0.0
    %77 = vmatpush2.msra.mxu0 0.0
    %78 = vmatprep.subr.mxu0 0.0
    %79 = vmatpush2.msra.mxu0 0.0
    %80 = vmatprep.subr.mxu0 0.0
    %81 = vmatpush2.msra.mxu0 0.0
    %82 = vmatprep.subr.mxu0 0.0
    %83 = vmatpush2.msra.mxu0 0.0
    %84 = vmatprep.subr.mxu0 0.0
    %85 = vmatpush2.msra.mxu0 0.0
    %86 = vmatprep.subr.mxu0 0.0
    %87 = vmatpush2.msra.mxu0 0.0
    %88 = vmatprep.subr.mxu0 0.0
    %89 = vmatpush2.msra.mxu0 0.0
    %90 = vmatprep.subr.mxu0 0.0
    %91 = vmatpush2.msra.mxu0 0.0
    %92 = vmatprep.subr.mxu0 0.0
    %93 = vmatpush2.msra.mxu0 0.0
    %94 = vmatprep.subr.mxu0 0.0
    %95 = vmatpush2.msra.mxu0 0.0
    %96 = vmatprep.subr.mxu0 0.0
    %97 = vmatpush2.msra.mxu0 0.0
    %98 = vmatprep.subr.mxu0 0.0
    %99 = vmatpush2.msra.mxu0 0.0
    %100 = vmatprep.mubr.f32.mxu0 0.0
    %101 = vmatmul.mubr.f32.gmra.mxu0 %v34
    %v102 = vpop.f32.mrf.mxu0
    %v103 = vadd.f32 %v31, %v102
    %v104 = vpop.f32.mrf.mxu0
    %105 = vdwg.mxu0
    %v106 = vmax.f32 %v103, 0.0
    %v107 = vld [vmem:[#allocation2 + $0x8] sm:$0xff]
    %v108 = vld [vmem:[#allocation2 + $0x10] sm:$0xff]
    %v109 = vld [vmem:[#allocation2 + $0x18] sm:$0xff]
    %v110 = vld [vmem:[#allocation2 + $0x20] sm:$0xff]
    %v111 = vld [vmem:[#allocation2 + $0x28] sm:$0xff]
    %v112 = vld [vmem:[#allocation2 + $0x30] sm:$0xff]
    %v113 = vld [vmem:[#allocation2 + $0x38] sm:$0xff]
    %v114 = vld [vmem:[#allocation2 + $0x40] sm:$0xff]
    %v115 = vld [vmem:[#allocation2 + $0x48] sm:$0xff]
    %v116 = vld [vmem:[#allocation2 + $0x50] sm:$0xff]
    %v117 = vld [vmem:[#allocation2 + $0x58] sm:$0xff]
    %v118 = vld [vmem:[#allocation2 + $0x60] sm:$0xff]
    %v119 = vld [vmem:[#allocation2 + $0x68] sm:$0xff]
    %v120 = vld [vmem:[#allocation2 + $0x70] sm:$0xff]
    %v121 = vld [vmem:[#allocation2 + $0x78] sm:$0xff]
    %v122 = vld [vmem:[#allocation2 + $0x80] sm:$0xff]
    %v123 = vlaneseq
    %v124 = vshrl.u32 %v123, 7
    %v125 = vsub.s32 1, %v124
    %v126 = vrot.slane %v26, %v125
    %127 = vmatprep.subr.mxu0 0.0
    %128 = vmatpush1.msra.mxu0 %v122
    %129 = vmatprep.subr.mxu0 0.0
    %130 = vmatpush1.msra.mxu0 %v121
    %131 = vmatprep.subr.mxu0 0.0
    %132 = vmatpush1.msra.mxu0 %v120
    %133 = vmatprep.subr.mxu0 0.0
    %134 = vmatpush1.msra.mxu0 %v119
    %135 = vmatprep.subr.mxu0 0.0
    %136 = vmatpush1.msra.mxu0 %v118
    %137 = vmatprep.subr.mxu0 0.0
    %138 = vmatpush1.msra.mxu0 %v117
    %139 = vmatprep.subr.mxu0 0.0
    %140 = vmatpush1.msra.mxu0 %v116
    %141 = vmatprep.subr.mxu0 0.0
    %142 = vmatpush1.msra.mxu0 %v115
    %143 = vmatprep.subr.mxu0 0.0
    %144 = vmatpush1.msra.mxu0 %v114
    %145 = vmatprep.subr.mxu0 0.0
    %146 = vmatpush1.msra.mxu0 %v113
    %147 = vmatprep.subr.mxu0 0.0
    %148 = vmatpush1.msra.mxu0 %v112
    %149 = vmatprep.subr.mxu0 0.0
    %150 = vmatpush1.msra.mxu0 %v111
    %151 = vmatprep.subr.mxu0 0.0
    %152 = vmatpush1.msra.mxu0 %v110
    %153 = vmatprep.subr.mxu0 0.0
    %154 = vmatpush1.msra.mxu0 %v109
    %155 = vmatprep.subr.mxu0 0.0
    %156 = vmatpush1.msra.mxu0 %v108
    %157 = vmatprep.subr.mxu0 0.0
    %158 = vmatpush1.msra.mxu0 %v107
    %159 = vmatprep.subr.mxu0 0.0
    %160 = vmatpush2.msra.mxu0 0.0
    %161 = vmatprep.subr.mxu0 0.0
    %162 = vmatpush2.msra.mxu0 0.0
    %163 = vmatprep.subr.mxu0 0.0
    %164 = vmatpush2.msra.mxu0 0.0
    %165 = vmatprep.subr.mxu0 0.0
    %166 = vmatpush2.msra.mxu0 0.0
    %167 = vmatprep.subr.mxu0 0.0
    %168 = vmatpush2.msra.mxu0 0.0
    %169 = vmatprep.subr.mxu0 0.0
    %170 = vmatpush2.msra.mxu0 0.0
    %171 = vmatprep.subr.mxu0 0.0
    %172 = vmatpush2.msra.mxu0 0.0
    %173 = vmatprep.subr.mxu0 0.0
    %174 = vmatpush2.msra.mxu0 0.0
    %175 = vmatprep.subr.mxu0 0.0
    %176 = vmatpush2.msra.mxu0 0.0
    %177 = vmatprep.subr.mxu0 0.0
    %178 = vmatpush2.msra.mxu0 0.0
    %179 = vmatprep.subr.mxu0 0.0
    %180 = vmatpush2.msra.mxu0 0.0
    %181 = vmatprep.subr.mxu0 0.0
    %182 = vmatpush2.msra.mxu0 0.0
    %183 = vmatprep.subr.mxu0 0.0
    %184 = vmatpush2.msra.mxu0 0.0
    %185 = vmatprep.subr.mxu0 0.0
    %186 = vmatpush2.msra.mxu0 0.0
    %187 = vmatprep.subr.mxu0 0.0
    %188 = vmatpush2.msra.mxu0 0.0
    %189 = vmatprep.subr.mxu0 0.0
    %190 = vmatpush2.msra.mxu0 0.0
    %191 = vmatprep.mubr.f32.mxu0 0.0
    %192 = vmatmul.mubr.f32.gmra.mxu0 %v106
    %v193 = vpop.f32.mrf.mxu0
    %v194 = vadd.f32 %v126, %v193
    %v195 = vpop.f32.mrf.mxu0
    %196 = vdwg.mxu0
    %v197 = vmax.f32 %v194, 0.0
    %v198 = vld [vmem:[#allocation2 + $0x88] sm:$0xff]
    %v199 = vld [vmem:[#allocation2 + $0x90] sm:$0xff]
    %v200 = vld [vmem:[#allocation2 + $0x98] sm:$0xff]
    %v201 = vld [vmem:[#allocation2 + $0xa0] sm:$0xff]
    %v202 = vld [vmem:[#allocation2 + $0xa8] sm:$0xff]
    %v203 = vld [vmem:[#allocation2 + $0xb0] sm:$0xff]
    %v204 = vld [vmem:[#allocation2 + $0xb8] sm:$0xff]
    %v205 = vld [vmem:[#allocation2 + $0xc0] sm:$0xff]
    %v206 = vld [vmem:[#allocation2 + $0xc8] sm:$0xff]
    %v207 = vld [vmem:[#allocation2 + $0xd0] sm:$0xff]
    %v208 = vld [vmem:[#allocation2 + $0xd8] sm:$0xff]
    %v209 = vld [vmem:[#allocation2 + $0xe0] sm:$0xff]
    %v210 = vld [vmem:[#allocation2 + $0xe8] sm:$0xff]
    %v211 = vld [vmem:[#allocation2 + $0xf0] sm:$0xff]
    %v212 = vld [vmem:[#allocation2 + $0xf8] sm:$0xff]
    %v213 = vld [vmem:[#allocation2 + $0x100] sm:$0xff]
    %v214 = vlaneseq
    %v215 = vshrl.u32 %v214, 7
    %v216 = vsub.s32 2, %v215
    %v217 = vrot.slane %v26, %v216
    %218 = vmatprep.subr.mxu0 0.0
    %219 = vmatpush1.msra.mxu0 %v213
    %220 = vmatprep.subr.mxu0 0.0
    %221 = vmatpush1.msra.mxu0 %v212
    %222 = vmatprep.subr.mxu0 0.0
    %223 = vmatpush1.msra.mxu0 %v211
    %224 = vmatprep.subr.mxu0 0.0
    %225 = vmatpush1.msra.mxu0 %v210
    %226 = vmatprep.subr.mxu0 0.0
    %227 = vmatpush1.msra.mxu0 %v209
    %228 = vmatprep.subr.mxu0 0.0
    %229 = vmatpush1.msra.mxu0 %v208
    %230 = vmatprep.subr.mxu0 0.0
    %231 = vmatpush1.msra.mxu0 %v207
    %232 = vmatprep.subr.mxu0 0.0
    %233 = vmatpush1.msra.mxu0 %v206
    %234 = vmatprep.subr.mxu0 0.0
    %235 = vmatpush1.msra.mxu0 %v205
    %236 = vmatprep.subr.mxu0 0.0
    %237 = vmatpush1.msra.mxu0 %v204
    %238 = vmatprep.subr.mxu0 0.0
    %239 = vmatpush1.msra.mxu0 %v203
    %240 = vmatprep.subr.mxu0 0.0
    %241 = vmatpush1.msra.mxu0 %v202
    %242 = vmatprep.subr.mxu0 0.0
    %243 = vmatpush1.msra.mxu0 %v201
    %244 = vmatprep.subr.mxu0 0.0
    %245 = vmatpush1.msra.mxu0 %v200
    %246 = vmatprep.subr.mxu0 0.0
    %247 = vmatpush1.msra.mxu0 %v199
    %248 = vmatprep.subr.mxu0 0.0
    %249 = vmatpush1.msra.mxu0 %v198
    %250 = vmatprep.subr.mxu0 0.0
    %251 = vmatpush2.msra.mxu0 0.0
    %252 = vmatprep.subr.mxu0 0.0
    %253 = vmatpush2.msra.mxu0 0.0
    %254 = vmatprep.subr.mxu0 0.0
    %255 = vmatpush2.msra.mxu0 0.0
    %256 = vmatprep.subr.mxu0 0.0
    %257 = vmatpush2.msra.mxu0 0.0
    %258 = vmatprep.subr.mxu0 0.0
    %259 = vmatpush2.msra.mxu0 0.0
    %260 = vmatprep.subr.mxu0 0.0
    %261 = vmatpush2.msra.mxu0 0.0
    %262 = vmatprep.subr.mxu0 0.0
    %263 = vmatpush2.msra.mxu0 0.0
    %264 = vmatprep.subr.mxu0 0.0
    %265 = vmatpush2.msra.mxu0 0.0
    %266 = vmatprep.subr.mxu0 0.0
    %267 = vmatpush2.msra.mxu0 0.0
    %268 = vmatprep.subr.mxu0 0.0
    %269 = vmatpush2.msra.mxu0 0.0
    %270 = vmatprep.subr.mxu0 0.0
    %271 = vmatpush2.msra.mxu0 0.0
    %272 = vmatprep.subr.mxu0 0.0
    %273 = vmatpush2.msra.mxu0 0.0
    %274 = vmatprep.subr.mxu0 0.0
    %275 = vmatpush2.msra.mxu0 0.0
    %276 = vmatprep.subr.mxu0 0.0
    %277 = vmatpush2.msra.mxu0 0.0
    %278 = vmatprep.subr.mxu0 0.0
    %279 = vmatpush2.msra.mxu0 0.0
    %280 = vmatprep.subr.mxu0 0.0
    %281 = vmatpush2.msra.mxu0 0.0
    %282 = vmatprep.mubr.f32.mxu0 0.0
    %283 = vmatmul.mubr.f32.gmra.mxu0 %v197
    %v284 = vpop.f32.mrf.mxu0
    %v285 = vadd.f32 %v217, %v284
    %v286 = vpop.f32.mrf.mxu0
    %287 = vdwg.mxu0
    %v288 = vmax.f32 %v285, 0.0
    %v289 = vld [vmem:[#allocation2 + $0x108] sm:$0xff]
    %v290 = vld [vmem:[#allocation2 + $0x110] sm:$0xff]
    %v291 = vld [vmem:[#allocation2 + $0x118] sm:$0xff]
    %v292 = vld [vmem:[#allocation2 + $0x120] sm:$0xff]
    %v293 = vld [vmem:[#allocation2 + $0x128] sm:$0xff]
    %v294 = vld [vmem:[#allocation2 + $0x130] sm:$0xff]
    %v295 = vld [vmem:[#allocation2 + $0x138] sm:$0xff]
    %v296 = vld [vmem:[#allocation2 + $0x140] sm:$0xff]
    %v297 = vld [vmem:[#allocation2 + $0x148] sm:$0xff]
    %v298 = vld [vmem:[#allocation2 + $0x150] sm:$0xff]
    %v299 = vld [vmem:[#allocation2 + $0x158] sm:$0xff]
    %v300 = vld [vmem:[#allocation2 + $0x160] sm:$0xff]
    %v301 = vld [vmem:[#allocation2 + $0x168] sm:$0xff]
    %v302 = vld [vmem:[#allocation2 + $0x170] sm:$0xff]
    %v303 = vld [vmem:[#allocation2 + $0x178] sm:$0xff]
    %v304 = vld [vmem:[#allocation2 + $0x180] sm:$0xff]
    %v305 = vlaneseq
    %v306 = vshrl.u32 %v305, 7
    %v307 = vsub.s32 3, %v306
    %v308 = vrot.slane %v26, %v307
    %309 = vmatprep.subr.mxu0 0.0
    %310 = vmatpush1.msra.mxu0 %v304
    %311 = vmatprep.subr.mxu0 0.0
    %312 = vmatpush1.msra.mxu0 %v303
    %313 = vmatprep.subr.mxu0 0.0
    %314 = vmatpush1.msra.mxu0 %v302
    %315 = vmatprep.subr.mxu0 0.0
    %316 = vmatpush1.msra.mxu0 %v301
    %317 = vmatprep.subr.mxu0 0.0
    %318 = vmatpush1.msra.mxu0 %v300
    %319 = vmatprep.subr.mxu0 0.0
    %320 = vmatpush1.msra.mxu0 %v299
    %321 = vmatprep.subr.mxu0 0.0
    %322 = vmatpush1.msra.mxu0 %v298
    %323 = vmatprep.subr.mxu0 0.0
    %324 = vmatpush1.msra.mxu0 %v297
    %325 = vmatprep.subr.mxu0 0.0
    %326 = vmatpush1.msra.mxu0 %v296
    %327 = vmatprep.subr.mxu0 0.0
    %328 = vmatpush1.msra.mxu0 %v295
    %329 = vmatprep.subr.mxu0 0.0
    %330 = vmatpush1.msra.mxu0 %v294
    %331 = vmatprep.subr.mxu0 0.0
    %332 = vmatpush1.msra.mxu0 %v293
    %333 = vmatprep.subr.mxu0 0.0
    %334 = vmatpush1.msra.mxu0 %v292
    %335 = vmatprep.subr.mxu0 0.0
    %336 = vmatpush1.msra.mxu0 %v291
    %337 = vmatprep.subr.mxu0 0.0
    %338 = vmatpush1.msra.mxu0 %v290
    %339 = vmatprep.subr.mxu0 0.0
    %340 = vmatpush1.msra.mxu0 %v289
    %341 = vmatprep.subr.mxu0 0.0
    %342 = vmatpush2.msra.mxu0 0.0
    %343 = vmatprep.subr.mxu0 0.0
    %344 = vmatpush2.msra.mxu0 0.0
    %345 = vmatprep.subr.mxu0 0.0
    %346 = vmatpush2.msra.mxu0 0.0
    %347 = vmatprep.subr.mxu0 0.0
    %348 = vmatpush2.msra.mxu0 0.0
    %349 = vmatprep.subr.mxu0 0.0
    %350 = vmatpush2.msra.mxu0 0.0
    %351 = vmatprep.subr.mxu0 0.0
    %352 = vmatpush2.msra.mxu0 0.0
    %353 = vmatprep.subr.mxu0 0.0
    %354 = vmatpush2.msra.mxu0 0.0
    %355 = vmatprep.subr.mxu0 0.0
    %356 = vmatpush2.msra.mxu0 0.0
    %357 = vmatprep.subr.mxu0 0.0
    %358 = vmatpush2.msra.mxu0 0.0
    %359 = vmatprep.subr.mxu0 0.0
    %360 = vmatpush2.msra.mxu0 0.0
    %361 = vmatprep.subr.mxu0 0.0
    %362 = vmatpush2.msra.mxu0 0.0
    %363 = vmatprep.subr.mxu0 0.0
    %364 = vmatpush2.msra.mxu0 0.0
    %365 = vmatprep.subr.mxu0 0.0
    %366 = vmatpush2.msra.mxu0 0.0
    %367 = vmatprep.subr.mxu0 0.0
    %368 = vmatpush2.msra.mxu0 0.0
    %369 = vmatprep.subr.mxu0 0.0
    %370 = vmatpush2.msra.mxu0 0.0
    %371 = vmatprep.subr.mxu0 0.0
    %372 = vmatpush2.msra.mxu0 0.0
    %373 = vmatprep.mubr.f32.mxu0 0.0
    %374 = vmatmul.mubr.f32.gmra.mxu0 %v288
    %v375 = vpop.f32.mrf.mxu0
    %v376 = vadd.f32 %v308, %v375
    %v377 = vpop.f32.mrf.mxu0
    %378 = vdwg.mxu0
    %v379 = vmax.f32 %v376, 0.0
    %v380 = vand.u32 2147483647, %v376
    %v381 = vsub.f32 0.0, %v380
    %v382 = vmul.f32 %v381, 1.442695
    %v383 = vpow.pop %v382
    %v384 = vadd.f32 %v383, 1.0
    %v385 = vlog2.pop %v384
    %v386 = vmul.f32 %v385, 0.6931472
    %v387 = vadd.f32 %v379, %v386
    %v388 = vadd.f32 %v387, 1e-06
    %v389 = vlaneseq
    %v390 = vand.u32 %v389, 127
    %vm391 = vcmp.ge.s32.totalorder %v390, 4
    %vm392 = vcmp.lt.s32.totalorder %v390, 8
    %vm393 = vmand %vm391, %vm392
    %v394 = vsel %vm393, %v388, %v376
    %395 = vst [vmem:[%s2] sm:$0xff] %v394
    // Predicated region
    $region14: #{actor_critic_forward.1} parent=1 // pred_check
      _
    $region15: #{actor_critic_forward.1} parent=1 // pred_check_branch
      %397 = sbr.rel (0) target = $region17
    $region16: #{actor_critic_forward.1} parent=1 // pred_region
      _
    $region17: #{actor_critic_forward.1} parent=1 // pred_fallthru
      _
    // Predicated region
    $region18: #{actor_critic_forward.1} parent=1 // pred_check
      _
    $region19: #{actor_critic_forward.1} parent=1 // pred_check_branch
      %399 = sbr.rel (0) target = $region21
    $region20: #{actor_critic_forward.1} parent=1 // pred_region
      _
    $region21: #{actor_critic_forward.1} parent=1 // pred_fallthru
      _
    %400 = vsyncpa [#allocation3], 1

</llo_original>
